<compile_context>
chip_gen: v7x
topology: tpu7x:2x2x1
jax: 0.10.0
libtpu: 0.0.40
codegen_flags: <defaults>
</compile_context>

<pallas_src>
import jax
import jax.numpy as jnp
from jax.experimental import pallas as pl
from jax.experimental.pallas import tpu as pltpu

D = 8          # pooled-feature / hidden / output width
MAX_TB = 512   # batch-tile cap (rows); 2 bufs * 512 * 128 lanes * 4B << 32 MiB


def _multitask_head_kernel(x_ref, w_ref, b_ref, out_ref):
    """x_ref: (TB, 8); w_ref: (24, 8) = [wm; Wq_pad; Wva_pad]; b_ref: (2, 8)."""
    x = x_ref[...].astype(jnp.float32)

    # Sublane-aligned (multiples of 8) static slices of the packed weight slab.
    wm = w_ref[0:8, :]     # fc_middle weight, (in, out)
    wq = w_ref[8:16, :]    # fc_quadrant weight zero-padded into cols 0:4
    wva = w_ref[16:24, :]  # [fc_valence | fc_arousal] packed into cols 4:8
    bm = b_ref[0:1, :]     # fc_middle bias
    bf = b_ref[1:2, :]     # fused [bq | bv | ba] bias

    # fc_middle: ReLU -> Linear(8, 8) -> Dropout(0.25) (identity in eval)
    h = jnp.dot(jnp.maximum(x, 0.0), wm, preferred_element_type=jnp.float32) + bm

    # Fused heads: concat([quadrant(relu(h)), valence(h), arousal(h)])
    #   == relu(h) @ Wq_pad + h @ Wva_pad + b_fused   (no lane concat needed)
    out = (jnp.dot(jnp.maximum(h, 0.0), wq, preferred_element_type=jnp.float32)
           + jnp.dot(h, wva, preferred_element_type=jnp.float32)
           + bf)
    out_ref[...] = out.astype(out_ref.dtype)


def pack_params(params):
    """Pack the four (w, b) pairs into one (24, 8) weight slab + (2, 8) bias slab."""
    (wm, bm), (wq, bq), (wv, bv), (wa, ba) = params
    zeros4 = jnp.zeros((D, 4), jnp.float32)
    wq_pad = jnp.concatenate([wq, zeros4], axis=1)         # (8, 8): quadrant in cols 0:4
    wva_pad = jnp.concatenate([zeros4, wv, wa], axis=1)    # (8, 8): valence|arousal in cols 4:8
    w_slab = jnp.concatenate([wm, wq_pad, wva_pad], axis=0)   # (24, 8)
    b_fused = jnp.concatenate([bq, bv, ba], axis=1)            # (1, 8)
    b_slab = jnp.concatenate([bm, b_fused], axis=0)            # (2, 8)
    return w_slab, b_slab


def multitask_head(x, packed):
    """x: [B, 8] pooled transformer features. Returns [B, 8] = cat([q, v, a])."""
    B, d = x.shape
    assert d == D
    w_slab, b_slab = packed

    # Batch tile: multiple of 8 (f32 sublane), capped so VMEM is bounded on v7x.
    tb = min(MAX_TB, max(8, ((B + 7) // 8) * 8))
    n_blocks = pl.cdiv(B, tb)
    b_pad = n_blocks * tb
    if b_pad != B:
        x = jnp.pad(x, ((0, b_pad - B), (0, 0)))

    out = pl.pallas_call(
        _multitask_head_kernel,
        out_shape=jax.ShapeDtypeStruct((b_pad, D), jnp.float32),
        grid=(n_blocks,),
        in_specs=[
            pl.BlockSpec((tb, D), lambda i: (i, 0)),       # x: tiled over batch
            pl.BlockSpec((24, D), lambda i: (0, 0)),       # weight slab: resident
            pl.BlockSpec((2, D), lambda i: (0, 0)),        # bias slab: resident
        ],
        out_specs=pl.BlockSpec((tb, D), lambda i: (i, 0)),
        compiler_params=pltpu.CompilerParams(
            dimension_semantics=("parallel",)),            # megacore on v7x
    )(x, w_slab, b_slab)

    return out[:B] if b_pad != B else out


def init_params(key):
    """Deterministic parameter init.

    PyTorch nn.Linear stores weight as (out, in) and computes y = x @ W.T + b.
    We store the already-transposed (in, out) matrices so the kernel does
    plain x @ W.  Biases are kept as (1, out) for clean 2-D broadcasting.
    """
    def linear(k, d_in, d_out):
        kw, kb = jax.random.split(k)
        bound = 1.0 / (d_in ** 0.5)
        w = jax.random.uniform(kw, (d_in, d_out), jnp.float32, -bound, bound)
        b = jax.random.uniform(kb, (1, d_out), jnp.float32, -bound, bound)
        return w, b

    k_mid, k_q, k_v, k_a = jax.random.split(key, 4)
    return (
        linear(k_mid, 8, 8),   # fc_middle   Linear(8, 8)
        linear(k_q, 8, 4),     # fc_quadrant Linear(8, 4)
        linear(k_v, 8, 2),     # fc_valence  Linear(8, 2)
        linear(k_a, 8, 2),     # fc_arousal  Linear(8, 2)
    )


def _reference(x, params):
    """Pure-JAX reference of the head (eval-mode dropout), unpacked params."""
    (wm, bm), (wq, bq), (wv, bv), (wa, ba) = params
    h = jnp.maximum(x, 0.0) @ wm + bm
    q = jnp.maximum(h, 0.0) @ wq + bq
    v = h @ wv + bv
    a = h @ wa + ba
    return jnp.concatenate([q, v, a], axis=1)


if __name__ == "__main__":
    key = jax.random.PRNGKey(0)
    k_x, k_p = jax.random.split(key)

    B = 8  # small batch of pooled transformer features
    x = jax.random.normal(k_x, (B, D), jnp.float32)
    params = init_params(k_p)
    packed = pack_params(params)

    out = multitask_head(x, packed)
    jax.block_until_ready(out)

    ref = _reference(x, params)
    assert out.shape == (B, D)
    assert jnp.allclose(out, ref, atol=1e-5, rtol=1e-5)

    print("KERNEL_OK")
</pallas_src>

<mosaic_0001>
module attributes {stable_mosaic.version = 11 : i64} {
  func.func @_multitask_head_kernel(%arg0: i32, %arg1: memref<8x8xf32, #tpu.memory_space<vmem>>, %arg2: memref<24x8xf32, #tpu.memory_space<vmem>>, %arg3: memref<2x8xf32, #tpu.memory_space<vmem>>, %arg4: memref<8x8xf32, #tpu.memory_space<vmem>>) attributes {dimension_semantics = [#tpu.dimension_semantics<parallel>], iteration_bounds = array<i64: 1>, scalar_prefetch = 0 : i64, scratch_operands = 0 : i64, tpu.core_type = #tpu.core_type<tc>, window_params = [{transform_indices = @transform_0, window_bounds = array<i64: 8, 8>}, {pipeline_mode = #tpu.pipeline_mode<synchronous>, transform_indices = @transform_1, window_bounds = array<i64: 24, 8>}, {pipeline_mode = #tpu.pipeline_mode<synchronous>, transform_indices = @transform_2, window_bounds = array<i64: 2, 8>}, {transform_indices = @transform_3, window_bounds = array<i64: 8, 8>}]} {
    %c0 = arith.constant 0 : index
    %c0_0 = arith.constant 0 : index
    %0 = vector.load %arg1[%c0, %c0_0] : memref<8x8xf32, #tpu.memory_space<vmem>>, vector<8x8xf32>
    %c0_1 = arith.constant 0 : index
    %c0_2 = arith.constant 0 : index
    %1 = vector.load %arg2[%c0_1, %c0_2] : memref<24x8xf32, #tpu.memory_space<vmem>>, vector<8x8xf32>
    %c8 = arith.constant 8 : index
    %c0_3 = arith.constant 0 : index
    %2 = vector.load %arg2[%c8, %c0_3] : memref<24x8xf32, #tpu.memory_space<vmem>>, vector<8x8xf32>
    %c16 = arith.constant 16 : index
    %c0_4 = arith.constant 0 : index
    %3 = vector.load %arg2[%c16, %c0_4] : memref<24x8xf32, #tpu.memory_space<vmem>>, vector<8x8xf32>
    %c0_5 = arith.constant 0 : index
    %c0_6 = arith.constant 0 : index
    %4 = vector.load %arg3[%c0_5, %c0_6] : memref<2x8xf32, #tpu.memory_space<vmem>>, vector<1x8xf32>
    %c1 = arith.constant 1 : index
    %c0_7 = arith.constant 0 : index
    %5 = vector.load %arg3[%c1, %c0_7] : memref<2x8xf32, #tpu.memory_space<vmem>>, vector<1x8xf32>
    %cst = arith.constant 0.000000e+00 : f32
    %6 = vector.broadcast %cst : f32 to vector<8x8xf32>
    %7 = arith.maximumf %0, %6 : vector<8x8xf32>
    %cst_8 = arith.constant dense<0.000000e+00> : vector<8x8xf32>
    %8 = tpu.matmul %7, %1, %cst_8 {dimension_numbers = #tpu.dot_dimension_numbers<[1], [0], [0], [1], [0, 0, 1, 1], [], []>} : vector<8x8xf32>, vector<8x8xf32>, vector<8x8xf32> -> vector<8x8xf32>
    %9 = vector.broadcast %4 : vector<1x8xf32> to vector<8x8xf32>
    %10 = arith.addf %8, %9 : vector<8x8xf32>
    %cst_9 = arith.constant 0.000000e+00 : f32
    %11 = vector.broadcast %cst_9 : f32 to vector<8x8xf32>
    %12 = arith.maximumf %10, %11 : vector<8x8xf32>
    %cst_10 = arith.constant dense<0.000000e+00> : vector<8x8xf32>
    %13 = tpu.matmul %12, %2, %cst_10 {dimension_numbers = #tpu.dot_dimension_numbers<[1], [0], [0], [1], [0, 0, 1, 1], [], []>} : vector<8x8xf32>, vector<8x8xf32>, vector<8x8xf32> -> vector<8x8xf32>
    %cst_11 = arith.constant dense<0.000000e+00> : vector<8x8xf32>
    %14 = tpu.matmul %10, %3, %cst_11 {dimension_numbers = #tpu.dot_dimension_numbers<[1], [0], [0], [1], [0, 0, 1, 1], [], []>} : vector<8x8xf32>, vector<8x8xf32>, vector<8x8xf32> -> vector<8x8xf32>
    %15 = arith.addf %13, %14 : vector<8x8xf32>
    %16 = vector.broadcast %5 : vector<1x8xf32> to vector<8x8xf32>
    %17 = arith.addf %15, %16 : vector<8x8xf32>
    %c0_12 = arith.constant 0 : index
    %c0_13 = arith.constant 0 : index
    %18 = vector.load %arg4[%c0_12, %c0_13] : memref<8x8xf32, #tpu.memory_space<vmem>>, vector<8x8xf32>
    tpu.vector_store %arg4[%c0_12, %c0_13], %17 {strides = array<i32>} : memref<8x8xf32, #tpu.memory_space<vmem>>, vector<8x8xf32>,
    return
  }
  func.func @transform_0(%arg0: i32) -> (i32, i32) {
    %c0_i32 = arith.constant 0 : i32
    %c0_i32_0 = arith.constant 0 : i32
    return %arg0, %c0_i32 : i32, i32
  }
  func.func @transform_1(%arg0: i32) -> (i32, i32) {
    %c0_i32 = arith.constant 0 : i32
    %c0_i32_0 = arith.constant 0 : i32
    %c0_i32_1 = arith.constant 0 : i32
    return %c0_i32, %c0_i32_0 : i32, i32
  }
  func.func @transform_2(%arg0: i32) -> (i32, i32) {
    %c0_i32 = arith.constant 0 : i32
    %c0_i32_0 = arith.constant 0 : i32
    %c0_i32_1 = arith.constant 0 : i32
    return %c0_i32, %c0_i32_0 : i32, i32
  }
  func.func @transform_3(%arg0: i32) -> (i32, i32) {
    %c0_i32 = arith.constant 0 : i32
    %c0_i32_0 = arith.constant 0 : i32
    return %arg0, %c0_i32 : i32, i32
  }
}

</mosaic_0001>

<llo_original>
// kernel: tpu_custom_call.1
$region0: #{tpu_custom_call.1}
  #allocation0 [shape = 'u32[]', space=smem, size = 0x4, offset = 0x4, fixed_abs, tag = 'smem constant byte address 0x4 - core index']
  #allocation1 [shape = 'u32[144,128]{1,0:T(1,128)}', space=vmem, size = 0x12000, scoped, tag = 'internal scratch']
  %s0 = inlined_call_operand.vmem [shape: f32[8,8], index: 0, kind: input, shape index: {}]
  %s1 = inlined_call_operand.vmem [shape: f32[24,8], index: 1, kind: input, shape index: {}]
  %s2 = inlined_call_operand.vmem [shape: f32[2,8], index: 2, kind: input, shape index: {}]
  %s3 = inlined_call_operand.hbm [shape: f32[8,8], index: 3, kind: output, shape index: {}]
  %s4 = sld [smem:[#allocation0]]
  $region22: #{tpu_custom_call.1} parent=0
    _
  %s6 = ssub.s32 1, %s4
  %s7 = scalar_select 0, %s6, %s4
  $region1: #{tpu_custom_call.1} parent=0
    #allocation2 [shape = 'u8[4096]{0}', space=vmem, size = 0x1000, scoped, tag = 'output window, operand 0, single buffered']
    #allocation3 [shape = 's32[1]{0}', space=sflag, size = 0x4, scoped, tag = 'scoped memory for tpu_custom_call.1']
    %8 = vsyncpa [#allocation3], 0
    // Predicated region
    $region2: #{tpu_custom_call.1} parent=1 // pred_check
      _
    $region3: #{tpu_custom_call.1} parent=1 // pred_check_branch
      %10 = sbr.rel (0) target = $region5
    $region4: #{tpu_custom_call.1} parent=1 // pred_region
      _
    $region5: #{tpu_custom_call.1} parent=1 // pred_fallthru
      _
    // Predicated region
    $region6: #{tpu_custom_call.1} parent=1 // pred_check
      _
    $region7: #{tpu_custom_call.1} parent=1 // pred_check_branch
      %12 = sbr.rel (0) target = $region9
    $region8: #{tpu_custom_call.1} parent=1 // pred_region
      _
    $region9: #{tpu_custom_call.1} parent=1 // pred_fallthru
      _
    // Predicated region
    $region10: #{tpu_custom_call.1} parent=1 // pred_check
      _
    $region11: #{tpu_custom_call.1} parent=1 // pred_check_branch
      %14 = sbr.rel (0) target = $region13
    $region12: #{tpu_custom_call.1} parent=1 // pred_region
      _
    $region13: #{tpu_custom_call.1} parent=1 // pred_fallthru
      _
    %v15 = vld [vmem:[%s0] sm:$0xff]
    %v16 = vld [vmem:[%s1] sm:$0xff]
    %v17 = vld [vmem:[%s1 + $0x8] sm:$0xff]
    %v18 = vld [vmem:[%s1 + $0x10] sm:$0xff]
    %v19 = vld [vmem:[%s2] sm:$0x1]
    %v20 = vld [vmem:[%s2 + $0x1] sm:$0x1]
    %v21 = vmax.f32 %v15, 0.0
    %v22 = vlaneseq
    %v23 = vshrl.u32 %v22, 7
    %v24 = vsub.s32 0, %v23
    %v25 = vrot.slane %v19, %v24
    %vm26 = vcmask 64512
    %v28 = vsel %vm26, %v21, 0
    %30 = vmatprep.subr.mxu0 0.0
    %31 = vmatpush1.msra.mxu0 %v16
    %32 = vmatprep.subr.mxu0 0.0
    %33 = vmatpush1.msra.mxu0 0.0
    %34 = vmatprep.subr.mxu0 0.0
    %35 = vmatpush1.msra.mxu0 0.0
    %36 = vmatprep.subr.mxu0 0.0
    %37 = vmatpush1.msra.mxu0 0.0
    %38 = vmatprep.subr.mxu0 0.0
    %39 = vmatpush1.msra.mxu0 0.0
    %40 = vmatprep.subr.mxu0 0.0
    %41 = vmatpush1.msra.mxu0 0.0
    %42 = vmatprep.subr.mxu0 0.0
    %43 = vmatpush1.msra.mxu0 0.0
    %44 = vmatprep.subr.mxu0 0.0
    %45 = vmatpush1.msra.mxu0 0.0
    %46 = vmatprep.subr.mxu0 0.0
    %47 = vmatpush1.msra.mxu0 0.0
    %48 = vmatprep.subr.mxu0 0.0
    %49 = vmatpush1.msra.mxu0 0.0
    %50 = vmatprep.subr.mxu0 0.0
    %51 = vmatpush1.msra.mxu0 0.0
    %52 = vmatprep.subr.mxu0 0.0
    %53 = vmatpush1.msra.mxu0 0.0
    %54 = vmatprep.subr.mxu0 0.0
    %55 = vmatpush1.msra.mxu0 0.0
    %56 = vmatprep.subr.mxu0 0.0
    %57 = vmatpush1.msra.mxu0 0.0
    %58 = vmatprep.subr.mxu0 0.0
    %59 = vmatpush1.msra.mxu0 0.0
    %60 = vmatprep.subr.mxu0 0.0
    %61 = vmatpush1.msra.mxu0 0.0
    %62 = vmatprep.subr.mxu0 0.0
    %63 = vmatpush1.msra.mxu0 0.0
    %64 = vmatprep.subr.mxu0 0.0
    %65 = vmatpush1.msra.mxu0 0.0
    %66 = vmatprep.subr.mxu0 0.0
    %67 = vmatpush1.msra.mxu0 0.0
    %68 = vmatprep.subr.mxu0 0.0
    %69 = vmatpush1.msra.mxu0 0.0
    %70 = vmatprep.subr.mxu0 0.0
    %71 = vmatpush1.msra.mxu0 0.0
    %72 = vmatprep.subr.mxu0 0.0
    %73 = vmatpush1.msra.mxu0 0.0
    %74 = vmatprep.subr.mxu0 0.0
    %75 = vmatpush1.msra.mxu0 0.0
    %76 = vmatprep.subr.mxu0 0.0
    %77 = vmatpush1.msra.mxu0 0.0
    %78 = vmatprep.subr.mxu0 0.0
    %79 = vmatpush1.msra.mxu0 0.0
    %80 = vmatprep.subr.mxu0 0.0
    %81 = vmatpush1.msra.mxu0 0.0
    %82 = vmatprep.subr.mxu0 0.0
    %83 = vmatpush1.msra.mxu0 0.0
    %84 = vmatprep.subr.mxu0 0.0
    %85 = vmatpush1.msra.mxu0 0.0
    %86 = vmatprep.subr.mxu0 0.0
    %87 = vmatpush1.msra.mxu0 0.0
    %88 = vmatprep.subr.mxu0 0.0
    %89 = vmatpush1.msra.mxu0 0.0
    %90 = vmatprep.subr.mxu0 0.0
    %91 = vmatpush1.msra.mxu0 0.0
    %92 = vmatprep.subr.mxu0 0.0
    %93 = vmatpush1.msra.mxu0 0.0
    %94 = vmatprep.mubr.f32.mxu0 0.0
    %95 = vmatmul.mubr.f32.gmra.mrb[0].mxu0 %v28
    %v96 = vpop.f32.mrb[0].mxu0
    %v97 = vadd.f32 %v25, %v96
    %v98 = vpop.f32.mrb[0].mxu0
    %99 = vdwg.mxu0
    %v100 = vmax.f32 %v97, 0.0
    %v102 = vsel %vm26, %v97, 0
    %104 = vmatprep.subr.mxu0 0.0
    %105 = vmatpush1.msra.mxu0 %v18
    %106 = vmatprep.subr.mxu0 0.0
    %107 = vmatpush1.msra.mxu0 0.0
    %108 = vmatprep.subr.mxu0 0.0
    %109 = vmatpush1.msra.mxu0 0.0
    %110 = vmatprep.subr.mxu0 0.0
    %111 = vmatpush1.msra.mxu0 0.0
    %112 = vmatprep.subr.mxu0 0.0
    %113 = vmatpush1.msra.mxu0 0.0
    %114 = vmatprep.subr.mxu0 0.0
    %115 = vmatpush1.msra.mxu0 0.0
    %116 = vmatprep.subr.mxu0 0.0
    %117 = vmatpush1.msra.mxu0 0.0
    %118 = vmatprep.subr.mxu0 0.0
    %119 = vmatpush1.msra.mxu0 0.0
    %120 = vmatprep.subr.mxu0 0.0
    %121 = vmatpush1.msra.mxu0 0.0
    %122 = vmatprep.subr.mxu0 0.0
    %123 = vmatpush1.msra.mxu0 0.0
    %124 = vmatprep.subr.mxu0 0.0
    %125 = vmatpush1.msra.mxu0 0.0
    %126 = vmatprep.subr.mxu0 0.0
    %127 = vmatpush1.msra.mxu0 0.0
    %128 = vmatprep.subr.mxu0 0.0
    %129 = vmatpush1.msra.mxu0 0.0
    %130 = vmatprep.subr.mxu0 0.0
    %131 = vmatpush1.msra.mxu0 0.0
    %132 = vmatprep.subr.mxu0 0.0
    %133 = vmatpush1.msra.mxu0 0.0
    %134 = vmatprep.subr.mxu0 0.0
    %135 = vmatpush1.msra.mxu0 0.0
    %136 = vmatprep.subr.mxu0 0.0
    %137 = vmatpush1.msra.mxu0 0.0
    %138 = vmatprep.subr.mxu0 0.0
    %139 = vmatpush1.msra.mxu0 0.0
    %140 = vmatprep.subr.mxu0 0.0
    %141 = vmatpush1.msra.mxu0 0.0
    %142 = vmatprep.subr.mxu0 0.0
    %143 = vmatpush1.msra.mxu0 0.0
    %144 = vmatprep.subr.mxu0 0.0
    %145 = vmatpush1.msra.mxu0 0.0
    %146 = vmatprep.subr.mxu0 0.0
    %147 = vmatpush1.msra.mxu0 0.0
    %148 = vmatprep.subr.mxu0 0.0
    %149 = vmatpush1.msra.mxu0 0.0
    %150 = vmatprep.subr.mxu0 0.0
    %151 = vmatpush1.msra.mxu0 0.0
    %152 = vmatprep.subr.mxu0 0.0
    %153 = vmatpush1.msra.mxu0 0.0
    %154 = vmatprep.subr.mxu0 0.0
    %155 = vmatpush1.msra.mxu0 0.0
    %156 = vmatprep.subr.mxu0 0.0
    %157 = vmatpush1.msra.mxu0 0.0
    %158 = vmatprep.subr.mxu0 0.0
    %159 = vmatpush1.msra.mxu0 0.0
    %160 = vmatprep.subr.mxu0 0.0
    %161 = vmatpush1.msra.mxu0 0.0
    %162 = vmatprep.subr.mxu0 0.0
    %163 = vmatpush1.msra.mxu0 0.0
    %164 = vmatprep.subr.mxu0 0.0
    %165 = vmatpush1.msra.mxu0 0.0
    %166 = vmatprep.subr.mxu0 0.0
    %167 = vmatpush1.msra.mxu0 0.0
    %168 = vmatprep.mubr.f32.mxu0 0.0
    %169 = vmatmul.mubr.f32.gmra.mrb[0].mxu0 %v102
    %v170 = vpop.f32.mrb[0].mxu0
    %v171 = vadd.f32 0.0, %v170
    %v172 = vpop.f32.mrb[0].mxu0
    %173 = vdwg.mxu0
    %v175 = vsel %vm26, %v100, 0
    %177 = vmatprep.subr.mxu0 0.0
    %178 = vmatpush1.msra.mxu0 %v17
    %179 = vmatprep.subr.mxu0 0.0
    %180 = vmatpush1.msra.mxu0 0.0
    %181 = vmatprep.subr.mxu0 0.0
    %182 = vmatpush1.msra.mxu0 0.0
    %183 = vmatprep.subr.mxu0 0.0
    %184 = vmatpush1.msra.mxu0 0.0
    %185 = vmatprep.subr.mxu0 0.0
    %186 = vmatpush1.msra.mxu0 0.0
    %187 = vmatprep.subr.mxu0 0.0
    %188 = vmatpush1.msra.mxu0 0.0
    %189 = vmatprep.subr.mxu0 0.0
    %190 = vmatpush1.msra.mxu0 0.0
    %191 = vmatprep.subr.mxu0 0.0
    %192 = vmatpush1.msra.mxu0 0.0
    %193 = vmatprep.subr.mxu0 0.0
    %194 = vmatpush1.msra.mxu0 0.0
    %195 = vmatprep.subr.mxu0 0.0
    %196 = vmatpush1.msra.mxu0 0.0
    %197 = vmatprep.subr.mxu0 0.0
    %198 = vmatpush1.msra.mxu0 0.0
    %199 = vmatprep.subr.mxu0 0.0
    %200 = vmatpush1.msra.mxu0 0.0
    %201 = vmatprep.subr.mxu0 0.0
    %202 = vmatpush1.msra.mxu0 0.0
    %203 = vmatprep.subr.mxu0 0.0
    %204 = vmatpush1.msra.mxu0 0.0
    %205 = vmatprep.subr.mxu0 0.0
    %206 = vmatpush1.msra.mxu0 0.0
    %207 = vmatprep.subr.mxu0 0.0
    %208 = vmatpush1.msra.mxu0 0.0
    %209 = vmatprep.subr.mxu0 0.0
    %210 = vmatpush1.msra.mxu0 0.0
    %211 = vmatprep.subr.mxu0 0.0
    %212 = vmatpush1.msra.mxu0 0.0
    %213 = vmatprep.subr.mxu0 0.0
    %214 = vmatpush1.msra.mxu0 0.0
    %215 = vmatprep.subr.mxu0 0.0
    %216 = vmatpush1.msra.mxu0 0.0
    %217 = vmatprep.subr.mxu0 0.0
    %218 = vmatpush1.msra.mxu0 0.0
    %219 = vmatprep.subr.mxu0 0.0
    %220 = vmatpush1.msra.mxu0 0.0
    %221 = vmatprep.subr.mxu0 0.0
    %222 = vmatpush1.msra.mxu0 0.0
    %223 = vmatprep.subr.mxu0 0.0
    %224 = vmatpush1.msra.mxu0 0.0
    %225 = vmatprep.subr.mxu0 0.0
    %226 = vmatpush1.msra.mxu0 0.0
    %227 = vmatprep.subr.mxu0 0.0
    %228 = vmatpush1.msra.mxu0 0.0
    %229 = vmatprep.subr.mxu0 0.0
    %230 = vmatpush1.msra.mxu0 0.0
    %231 = vmatprep.subr.mxu0 0.0
    %232 = vmatpush1.msra.mxu0 0.0
    %233 = vmatprep.subr.mxu0 0.0
    %234 = vmatpush1.msra.mxu0 0.0
    %235 = vmatprep.subr.mxu0 0.0
    %236 = vmatpush1.msra.mxu0 0.0
    %237 = vmatprep.subr.mxu0 0.0
    %238 = vmatpush1.msra.mxu0 0.0
    %239 = vmatprep.subr.mxu0 0.0
    %240 = vmatpush1.msra.mxu0 0.0
    %241 = vmatprep.mubr.f32.mxu0 0.0
    %242 = vmatmul.mubr.f32.gmra.mrb[0].mxu0 %v175
    %v243 = vpop.f32.mrb[0].mxu0
    %v244 = vadd.f32 %v171, %v243
    %v245 = vpop.f32.mrb[0].mxu0
    %246 = vdwg.mxu0
    %v247 = vlaneseq
    %v248 = vshrl.u32 %v247, 7
    %v249 = vsub.s32 0, %v248
    %v250 = vrot.slane %v20, %v249
    %v251 = vadd.f32 %v244, %v250
    %252 = vst.msk [vmem:[#allocation2] sm:$0xff] %vm26, %v251
    // Predicated region
    $region14: #{tpu_custom_call.1} parent=1 // pred_check
      _
    $region15: #{tpu_custom_call.1} parent=1 // pred_check_branch
      %254 = sbr.rel (0) target = $region17
    $region16: #{tpu_custom_call.1} parent=1 // pred_region
      %s256 = ssub.s32 128, 128
      %257 = vsyncadd [#allocation3], %s256
      %s259 = sshll.u32 [#allocation2], 4
      %s260 = int_to_ptr.vmem [resolvable:$true] %s259
      %262 = dma.vmem_to_hbm [thread:$0]  %s260, 128, %s3, [#allocation3]
    $region17: #{tpu_custom_call.1} parent=1 // pred_fallthru
      _
    // Predicated region
    $region18: #{tpu_custom_call.1} parent=1 // pred_check
      _
    $region19: #{tpu_custom_call.1} parent=1 // pred_check_branch
      %264 = sbr.rel (0) target = $region21
    $region20: #{tpu_custom_call.1} parent=1 // pred_region
      %265 = dma.done [#allocation3], 128
    $region21: #{tpu_custom_call.1} parent=1 // pred_fallthru
      _
    %266 = vsyncpa [#allocation3], 1

</llo_original>
